<compile_context>
chip_gen: v7x
topology: tpu7x:2x2x1
jax: 0.10.0
libtpu: 0.0.40
codegen_flags: <defaults>
</compile_context>

<pallas_src>
import jax
import jax.numpy as jnp
from jax.experimental import pallas as pl
from jax.experimental.pallas import tpu as pltpu


# ---------------------------------------------------------------------------
# Exact replica of the PyTorch helper (pure Python, no torch).
# ---------------------------------------------------------------------------
def get_padding_shape(filter_shape, stride):
    def _pad_top_bottom(filter_dim, stride_val):
        pad_along = max(filter_dim - stride_val, 0)
        pad_top = pad_along // 2
        pad_bottom = pad_along - pad_top
        return (pad_top, pad_bottom)

    padding_shape = []
    for filter_dim, stride_val in zip(filter_shape, stride):
        pad_top, pad_bottom = _pad_top_bottom(filter_dim, stride_val)
        padding_shape.append(pad_top)
        padding_shape.append(pad_bottom)
    depth_top = padding_shape.pop(0)
    depth_bottom = padding_shape.pop(0)
    padding_shape.append(depth_top)
    padding_shape.append(depth_bottom)
    return tuple(padding_shape)


def _ceil_pool_out(n, k, s):
    # PyTorch MaxPool3d output size with padding=0, dilation=1, ceil_mode=True.
    out = (n - k + s - 1) // s + 1
    if (out - 1) * s >= n:
        out -= 1
    return out


def _max_identity(dtype):
    dtype = jnp.dtype(dtype)
    if jnp.issubdtype(dtype, jnp.floating):
        return float('-inf')
    if jnp.issubdtype(dtype, jnp.integer):
        return int(jnp.iinfo(dtype).min)
    raise ValueError(f"unsupported dtype for max pooling: {dtype}")


# ---------------------------------------------------------------------------
# Pallas kernel factory.
#
# The kernel receives kd input refs (depth slices od*sd + jd, jd = 0..kd-1), each of
# shape (H_ext, W_ext, Cb), and one output ref of shape (OH, OW, Cb).  All window
# offsets are static, so every read is a static (possibly strided) slice; the
# accumulator is initialized from the first window slice and the output is written
# exactly once.
# ---------------------------------------------------------------------------
def _make_pool_kernel(kd, kh, kw, sh, sw, OH, OW):
    def _win(start, size, stride):
        return pl.ds(start, size) if stride == 1 else pl.ds(start, size, stride=stride)

    def kernel(*refs):
        x_refs = refs[:kd]
        o_ref = refs[kd]
        acc = None
        for xr in x_refs:                       # static unroll over depth offsets
            for jh in range(kh):                # static unroll over H offsets
                hsl = _win(jh, OH, sh)
                for jw in range(kw):            # static unroll over W offsets
                    v = xr[hsl, _win(jw, OW, sw), :]
                    acc = v if acc is None else jnp.maximum(acc, v)
        o_ref[...] = acc

    return kernel


# ---------------------------------------------------------------------------
# Module equivalent (forward pass of MaxPool3dTFPadding).
# ---------------------------------------------------------------------------
class MaxPool3dTFPadding:
    def __init__(self, kernel_size, stride=None, padding='SAME'):
        assert padding == 'SAME', "only SAME padding implemented (matches the module's real use)"
        if stride is None:
            stride = kernel_size
        self.kernel_size = tuple(kernel_size)
        self.stride = tuple(stride)
        self.padding_shape = get_padding_shape(self.kernel_size, self.stride)

    def __call__(self, x):
        kd, kh, kw = self.kernel_size
        sd, sh, sw = self.stride
        ps = self.padding_shape
        # torch.nn.ConstantPad3d order: (W_left, W_right, H_top, H_bottom, D_front, D_back)
        pad_w, pad_h, pad_d = (ps[0], ps[1]), (ps[2], ps[3]), (ps[4], ps[5])

        N, C, D, H, W = x.shape
        Dp = D + pad_d[0] + pad_d[1]
        Hp = H + pad_h[0] + pad_h[1]
        Wp = W + pad_w[0] + pad_w[1]

        # ceil_mode output sizes (exact torch formula, padding=0 inside MaxPool3d).
        OD = _ceil_pool_out(Dp, kd, sd)
        OH = _ceil_pool_out(Hp, kh, sh)
        OW = _ceil_pool_out(Wp, kw, sw)

        # Extents such that every window position is readable; the extension region
        # is filled with the max-identity so clipped (ceil) windows reduce over valid
        # data only — matching PyTorch's clipped-window max.
        D_ext = (OD - 1) * sd + kd
        H_ext = (OH - 1) * sh + kh
        W_ext = (OW - 1) * sw + kw

        ident = _max_identity(x.dtype)

        # Channel (lane) tiling: 128-wide lane blocks whenever C >= 128, padding C up
        # to a multiple of 128 (pad channels are discarded after the kernel).
        if C >= 128:
            Cb = 128
            Cpad = -(-C // 128) * 128
        else:
            Cb = C                      # full-dim lane block (allowed by Pallas)
            Cpad = C

        # --- single wrapper prep pass: NCDHW -> NDHWC; the pads below fuse into the
        # same XLA copy, so no extra full-HBM passes are materialized.
        xt = jnp.transpose(x, (0, 2, 3, 4, 1))                      # (N, D, H, W, C)
        xt = jnp.pad(xt, ((0, 0), pad_d, pad_h, pad_w, (0, 0)))     # TF-SAME zeros
        xt = jnp.pad(
            xt,
            ((0, 0), (0, D_ext - Dp), (0, H_ext - Hp), (0, W_ext - Wp), (0, Cpad - C)),
            constant_values=ident)                                  # ceil_mode clip region

        grid = (N, Cpad // Cb, OD)

        # kd input specs: spec jd selects the depth slice od*sd + jd for grid step od.
        in_specs = [
            pl.BlockSpec(
                (None, None, H_ext, W_ext, Cb),
                lambda n, c, od, _jd=jd: (n, od * sd + _jd, 0, 0, c))
            for jd in range(kd)
        ]
        out_spec = pl.BlockSpec(
            (None, None, OH, OW, Cb),
            lambda n, c, od: (n, od, 0, 0, c))

        itemsize = jnp.dtype(x.dtype).itemsize
        in_block_bytes = H_ext * W_ext * Cb * itemsize
        out_block_bytes = OH * OW * Cb * itemsize
        vmem_limit = int(min(max(3 * (kd * in_block_bytes + out_block_bytes),
                                 32 * 1024 * 1024),
                             100 * 1024 * 1024))

        out_t = pl.pallas_call(
            _make_pool_kernel(kd, kh, kw, sh, sw, OH, OW),
            out_shape=jax.ShapeDtypeStruct((N, OD, OH, OW, Cpad), x.dtype),
            grid=grid,
            in_specs=in_specs,
            out_specs=out_spec,
            compiler_params=pltpu.CompilerParams(
                dimension_semantics=("parallel", "parallel", "parallel"),
                vmem_limit_bytes=vmem_limit),
        )(*([xt] * kd))

        if Cpad != C:
            out_t = out_t[..., :C]          # drop lane-padding channels (fuses below)
        return jnp.transpose(out_t, (0, 4, 1, 2, 3))                # back to NCDHW


# ---------------------------------------------------------------------------
# Pure-JAX reference (same math via lax.reduce_window) for verification.
# ---------------------------------------------------------------------------
def reference_maxpool3d_tf(x, kernel_size, stride):
    kd, kh, kw = kernel_size
    sd, sh, sw = stride
    ps = get_padding_shape(kernel_size, stride)
    xp = jnp.pad(x, ((0, 0), (0, 0), (ps[4], ps[5]), (ps[2], ps[3]), (ps[0], ps[1])))
    _, _, Dp, Hp, Wp = xp.shape
    OD = _ceil_pool_out(Dp, kd, sd)
    OH = _ceil_pool_out(Hp, kh, sh)
    OW = _ceil_pool_out(Wp, kw, sw)
    ed = (OD - 1) * sd + kd - Dp
    eh = (OH - 1) * sh + kh - Hp
    ew = (OW - 1) * sw + kw - Wp
    ident = _max_identity(x.dtype)
    return jax.lax.reduce_window(
        xp, ident, jax.lax.max,
        window_dimensions=(1, 1, kd, kh, kw),
        window_strides=(1, 1, sd, sh, sw),
        padding=((0, 0), (0, 0), (0, ed), (0, eh), (0, ew)))


if __name__ == "__main__":
    key = jax.random.PRNGKey(0)
    k1, k2 = jax.random.split(key)

    # Test 1: overlapping windows in all three dims (k=3, s=2), small C (< 128 lane block).
    x1 = jax.random.normal(k1, (2, 4, 8, 16, 16), dtype=jnp.float32)
    pool1 = MaxPool3dTFPadding(kernel_size=(3, 3, 3), stride=(2, 2, 2), padding='SAME')
    out1 = jax.block_until_ready(pool1(x1))
    ref1 = reference_maxpool3d_tf(x1, (3, 3, 3), (2, 2, 2))
    assert out1.shape == ref1.shape, (out1.shape, ref1.shape)
    assert bool(jnp.array_equal(out1, ref1)), "Pallas max-pool mismatch vs reference (test 1)"

    # Test 2: C > 128 (exercises 128-wide lane tiling + channel padding), spatial-only
    # pool with clipped ceil_mode windows (identity-extension path).
    x2 = jax.random.normal(k2, (1, 192, 5, 9, 9), dtype=jnp.float32)
    pool2 = MaxPool3dTFPadding(kernel_size=(1, 3, 3), stride=(1, 2, 2), padding='SAME')
    out2 = jax.block_until_ready(pool2(x2))
    ref2 = reference_maxpool3d_tf(x2, (1, 3, 3), (1, 2, 2))
    assert out2.shape == ref2.shape, (out2.shape, ref2.shape)
    assert bool(jnp.array_equal(out2, ref2)), "Pallas max-pool mismatch vs reference (test 2)"

    print("KERNEL_OK")
</pallas_src>

<mosaic_0001>
module attributes {stable_mosaic.version = 11 : i64} {
  func.func @kernel(%arg0: i32, %arg1: i32, %arg2: i32, %arg3: memref<1x1x17x17x4xf32, #tpu.memory_space<vmem>>, %arg4: memref<1x1x17x17x4xf32, #tpu.memory_space<vmem>>, %arg5: memref<1x1x17x17x4xf32, #tpu.memory_space<vmem>>, %arg6: memref<1x1x8x8x4xf32, #tpu.memory_space<vmem>>) attributes {dimension_semantics = [#tpu.dimension_semantics<parallel>, #tpu.dimension_semantics<parallel>, #tpu.dimension_semantics<parallel>], iteration_bounds = array<i64: 2, 1, 4>, scalar_prefetch = 0 : i64, scratch_operands = 0 : i64, tpu.core_type = #tpu.core_type<tc>, window_params = [{transform_indices = @transform_0, window_bounds = array<i64: 1, 1, 17, 17, 4>}, {transform_indices = @transform_1, window_bounds = array<i64: 1, 1, 17, 17, 4>}, {transform_indices = @transform_2, window_bounds = array<i64: 1, 1, 17, 17, 4>}, {transform_indices = @transform_3, window_bounds = array<i64: 1, 1, 8, 8, 4>}]} {
    %c0 = arith.constant 0 : index
    %c0_0 = arith.constant 0 : index
    %c0_1 = arith.constant 0 : index
    %c0_2 = arith.constant 0 : index
    %c0_3 = arith.constant 0 : index
    %0 = tpu.strided_load %arg3[%c0, %c0_0, %c0_1, %c0_2, %c0_3] {strides = array<i32: 1, 1, 2, 2, 1>} : memref<1x1x17x17x4xf32, #tpu.memory_space<vmem>>, vector<1x1x8x8x4xf32>
    %1 = vector.shape_cast %0 : vector<1x1x8x8x4xf32> to vector<8x8x4xf32>
    %c0_4 = arith.constant 0 : index
    %c0_5 = arith.constant 0 : index
    %c0_6 = arith.constant 0 : index
    %c1 = arith.constant 1 : index
    %c0_7 = arith.constant 0 : index
    %2 = tpu.strided_load %arg3[%c0_4, %c0_5, %c0_6, %c1, %c0_7] {strides = array<i32: 1, 1, 2, 2, 1>} : memref<1x1x17x17x4xf32, #tpu.memory_space<vmem>>, vector<1x1x8x8x4xf32>
    %3 = vector.shape_cast %2 : vector<1x1x8x8x4xf32> to vector<8x8x4xf32>
    %4 = arith.maximumf %1, %3 : vector<8x8x4xf32>
    %c0_8 = arith.constant 0 : index
    %c0_9 = arith.constant 0 : index
    %c0_10 = arith.constant 0 : index
    %c2 = arith.constant 2 : index
    %c0_11 = arith.constant 0 : index
    %5 = tpu.strided_load %arg3[%c0_8, %c0_9, %c0_10, %c2, %c0_11] {strides = array<i32: 1, 1, 2, 2, 1>} : memref<1x1x17x17x4xf32, #tpu.memory_space<vmem>>, vector<1x1x8x8x4xf32>
    %6 = vector.shape_cast %5 : vector<1x1x8x8x4xf32> to vector<8x8x4xf32>
    %7 = arith.maximumf %4, %6 : vector<8x8x4xf32>
    %c0_12 = arith.constant 0 : index
    %c0_13 = arith.constant 0 : index
    %c1_14 = arith.constant 1 : index
    %c0_15 = arith.constant 0 : index
    %c0_16 = arith.constant 0 : index
    %8 = tpu.strided_load %arg3[%c0_12, %c0_13, %c1_14, %c0_15, %c0_16] {strides = array<i32: 1, 1, 2, 2, 1>} : memref<1x1x17x17x4xf32, #tpu.memory_space<vmem>>, vector<1x1x8x8x4xf32>
    %9 = vector.shape_cast %8 : vector<1x1x8x8x4xf32> to vector<8x8x4xf32>
    %10 = arith.maximumf %7, %9 : vector<8x8x4xf32>
    %c0_17 = arith.constant 0 : index
    %c0_18 = arith.constant 0 : index
    %c1_19 = arith.constant 1 : index
    %c1_20 = arith.constant 1 : index
    %c0_21 = arith.constant 0 : index
    %11 = tpu.strided_load %arg3[%c0_17, %c0_18, %c1_19, %c1_20, %c0_21] {strides = array<i32: 1, 1, 2, 2, 1>} : memref<1x1x17x17x4xf32, #tpu.memory_space<vmem>>, vector<1x1x8x8x4xf32>
    %12 = vector.shape_cast %11 : vector<1x1x8x8x4xf32> to vector<8x8x4xf32>
    %13 = arith.maximumf %10, %12 : vector<8x8x4xf32>
    %c0_22 = arith.constant 0 : index
    %c0_23 = arith.constant 0 : index
    %c1_24 = arith.constant 1 : index
    %c2_25 = arith.constant 2 : index
    %c0_26 = arith.constant 0 : index
    %14 = tpu.strided_load %arg3[%c0_22, %c0_23, %c1_24, %c2_25, %c0_26] {strides = array<i32: 1, 1, 2, 2, 1>} : memref<1x1x17x17x4xf32, #tpu.memory_space<vmem>>, vector<1x1x8x8x4xf32>
    %15 = vector.shape_cast %14 : vector<1x1x8x8x4xf32> to vector<8x8x4xf32>
    %16 = arith.maximumf %13, %15 : vector<8x8x4xf32>
    %c0_27 = arith.constant 0 : index
    %c0_28 = arith.constant 0 : index
    %c2_29 = arith.constant 2 : index
    %c0_30 = arith.constant 0 : index
    %c0_31 = arith.constant 0 : index
    %17 = tpu.strided_load %arg3[%c0_27, %c0_28, %c2_29, %c0_30, %c0_31] {strides = array<i32: 1, 1, 2, 2, 1>} : memref<1x1x17x17x4xf32, #tpu.memory_space<vmem>>, vector<1x1x8x8x4xf32>
    %18 = vector.shape_cast %17 : vector<1x1x8x8x4xf32> to vector<8x8x4xf32>
    %19 = arith.maximumf %16, %18 : vector<8x8x4xf32>
    %c0_32 = arith.constant 0 : index
    %c0_33 = arith.constant 0 : index
    %c2_34 = arith.constant 2 : index
    %c1_35 = arith.constant 1 : index
    %c0_36 = arith.constant 0 : index
    %20 = tpu.strided_load %arg3[%c0_32, %c0_33, %c2_34, %c1_35, %c0_36] {strides = array<i32: 1, 1, 2, 2, 1>} : memref<1x1x17x17x4xf32, #tpu.memory_space<vmem>>, vector<1x1x8x8x4xf32>
    %21 = vector.shape_cast %20 : vector<1x1x8x8x4xf32> to vector<8x8x4xf32>
    %22 = arith.maximumf %19, %21 : vector<8x8x4xf32>
    %c0_37 = arith.constant 0 : index
    %c0_38 = arith.constant 0 : index
    %c2_39 = arith.constant 2 : index
    %c2_40 = arith.constant 2 : index
    %c0_41 = arith.constant 0 : index
    %23 = tpu.strided_load %arg3[%c0_37, %c0_38, %c2_39, %c2_40, %c0_41] {strides = array<i32: 1, 1, 2, 2, 1>} : memref<1x1x17x17x4xf32, #tpu.memory_space<vmem>>, vector<1x1x8x8x4xf32>
    %24 = vector.shape_cast %23 : vector<1x1x8x8x4xf32> to vector<8x8x4xf32>
    %25 = arith.maximumf %22, %24 : vector<8x8x4xf32>
    %c0_42 = arith.constant 0 : index
    %c0_43 = arith.constant 0 : index
    %c0_44 = arith.constant 0 : index
    %c0_45 = arith.constant 0 : index
    %c0_46 = arith.constant 0 : index
    %26 = tpu.strided_load %arg4[%c0_42, %c0_43, %c0_44, %c0_45, %c0_46] {strides = array<i32: 1, 1, 2, 2, 1>} : memref<1x1x17x17x4xf32, #tpu.memory_space<vmem>>, vector<1x1x8x8x4xf32>
    %27 = vector.shape_cast %26 : vector<1x1x8x8x4xf32> to vector<8x8x4xf32>
    %28 = arith.maximumf %25, %27 : vector<8x8x4xf32>
    %c0_47 = arith.constant 0 : index
    %c0_48 = arith.constant 0 : index
    %c0_49 = arith.constant 0 : index
    %c1_50 = arith.constant 1 : index
    %c0_51 = arith.constant 0 : index
    %29 = tpu.strided_load %arg4[%c0_47, %c0_48, %c0_49, %c1_50, %c0_51] {strides = array<i32: 1, 1, 2, 2, 1>} : memref<1x1x17x17x4xf32, #tpu.memory_space<vmem>>, vector<1x1x8x8x4xf32>
    %30 = vector.shape_cast %29 : vector<1x1x8x8x4xf32> to vector<8x8x4xf32>
    %31 = arith.maximumf %28, %30 : vector<8x8x4xf32>
    %c0_52 = arith.constant 0 : index
    %c0_53 = arith.constant 0 : index
    %c0_54 = arith.constant 0 : index
    %c2_55 = arith.constant 2 : index
    %c0_56 = arith.constant 0 : index
    %32 = tpu.strided_load %arg4[%c0_52, %c0_53, %c0_54, %c2_55, %c0_56] {strides = array<i32: 1, 1, 2, 2, 1>} : memref<1x1x17x17x4xf32, #tpu.memory_space<vmem>>, vector<1x1x8x8x4xf32>
    %33 = vector.shape_cast %32 : vector<1x1x8x8x4xf32> to vector<8x8x4xf32>
    %34 = arith.maximumf %31, %33 : vector<8x8x4xf32>
    %c0_57 = arith.constant 0 : index
    %c0_58 = arith.constant 0 : index
    %c1_59 = arith.constant 1 : index
    %c0_60 = arith.constant 0 : index
    %c0_61 = arith.constant 0 : index
    %35 = tpu.strided_load %arg4[%c0_57, %c0_58, %c1_59, %c0_60, %c0_61] {strides = array<i32: 1, 1, 2, 2, 1>} : memref<1x1x17x17x4xf32, #tpu.memory_space<vmem>>, vector<1x1x8x8x4xf32>
    %36 = vector.shape_cast %35 : vector<1x1x8x8x4xf32> to vector<8x8x4xf32>
    %37 = arith.maximumf %34, %36 : vector<8x8x4xf32>
    %c0_62 = arith.constant 0 : index
    %c0_63 = arith.constant 0 : index
    %c1_64 = arith.constant 1 : index
    %c1_65 = arith.constant 1 : index
    %c0_66 = arith.constant 0 : index
    %38 = tpu.strided_load %arg4[%c0_62, %c0_63, %c1_64, %c1_65, %c0_66] {strides = array<i32: 1, 1, 2, 2, 1>} : memref<1x1x17x17x4xf32, #tpu.memory_space<vmem>>, vector<1x1x8x8x4xf32>
    %39 = vector.shape_cast %38 : vector<1x1x8x8x4xf32> to vector<8x8x4xf32>
    %40 = arith.maximumf %37, %39 : vector<8x8x4xf32>
    %c0_67 = arith.constant 0 : index
    %c0_68 = arith.constant 0 : index
    %c1_69 = arith.constant 1 : index
    %c2_70 = arith.constant 2 : index
    %c0_71 = arith.constant 0 : index
    %41 = tpu.strided_load %arg4[%c0_67, %c0_68, %c1_69, %c2_70, %c0_71] {strides = array<i32: 1, 1, 2, 2, 1>} : memref<1x1x17x17x4xf32, #tpu.memory_space<vmem>>, vector<1x1x8x8x4xf32>
    %42 = vector.shape_cast %41 : vector<1x1x8x8x4xf32> to vector<8x8x4xf32>
    %43 = arith.maximumf %40, %42 : vector<8x8x4xf32>
    %c0_72 = arith.constant 0 : index
    %c0_73 = arith.constant 0 : index
    %c2_74 = arith.constant 2 : index
    %c0_75 = arith.constant 0 : index
    %c0_76 = arith.constant 0 : index
    %44 = tpu.strided_load %arg4[%c0_72, %c0_73, %c2_74, %c0_75, %c0_76] {strides = array<i32: 1, 1, 2, 2, 1>} : memref<1x1x17x17x4xf32, #tpu.memory_space<vmem>>, vector<1x1x8x8x4xf32>
    %45 = vector.shape_cast %44 : vector<1x1x8x8x4xf32> to vector<8x8x4xf32>
    %46 = arith.maximumf %43, %45 : vector<8x8x4xf32>
    %c0_77 = arith.constant 0 : index
    %c0_78 = arith.constant 0 : index
    %c2_79 = arith.constant 2 : index
    %c1_80 = arith.constant 1 : index
    %c0_81 = arith.constant 0 : index
    %47 = tpu.strided_load %arg4[%c0_77, %c0_78, %c2_79, %c1_80, %c0_81] {strides = array<i32: 1, 1, 2, 2, 1>} : memref<1x1x17x17x4xf32, #tpu.memory_space<vmem>>, vector<1x1x8x8x4xf32>
    %48 = vector.shape_cast %47 : vector<1x1x8x8x4xf32> to vector<8x8x4xf32>
    %49 = arith.maximumf %46, %48 : vector<8x8x4xf32>
    %c0_82 = arith.constant 0 : index
    %c0_83 = arith.constant 0 : index
    %c2_84 = arith.constant 2 : index
    %c2_85 = arith.constant 2 : index
    %c0_86 = arith.constant 0 : index
    %50 = tpu.strided_load %arg4[%c0_82, %c0_83, %c2_84, %c2_85, %c0_86] {strides = array<i32: 1, 1, 2, 2, 1>} : memref<1x1x17x17x4xf32, #tpu.memory_space<vmem>>, vector<1x1x8x8x4xf32>
    %51 = vector.shape_cast %50 : vector<1x1x8x8x4xf32> to vector<8x8x4xf32>
    %52 = arith.maximumf %49, %51 : vector<8x8x4xf32>
    %c0_87 = arith.constant 0 : index
    %c0_88 = arith.constant 0 : index
    %c0_89 = arith.constant 0 : index
    %c0_90 = arith.constant 0 : index
    %c0_91 = arith.constant 0 : index
    %53 = tpu.strided_load %arg5[%c0_87, %c0_88, %c0_89, %c0_90, %c0_91] {strides = array<i32: 1, 1, 2, 2, 1>} : memref<1x1x17x17x4xf32, #tpu.memory_space<vmem>>, vector<1x1x8x8x4xf32>
    %54 = vector.shape_cast %53 : vector<1x1x8x8x4xf32> to vector<8x8x4xf32>
    %55 = arith.maximumf %52, %54 : vector<8x8x4xf32>
    %c0_92 = arith.constant 0 : index
    %c0_93 = arith.constant 0 : index
    %c0_94 = arith.constant 0 : index
    %c1_95 = arith.constant 1 : index
    %c0_96 = arith.constant 0 : index
    %56 = tpu.strided_load %arg5[%c0_92, %c0_93, %c0_94, %c1_95, %c0_96] {strides = array<i32: 1, 1, 2, 2, 1>} : memref<1x1x17x17x4xf32, #tpu.memory_space<vmem>>, vector<1x1x8x8x4xf32>
    %57 = vector.shape_cast %56 : vector<1x1x8x8x4xf32> to vector<8x8x4xf32>
    %58 = arith.maximumf %55, %57 : vector<8x8x4xf32>
    %c0_97 = arith.constant 0 : index
    %c0_98 = arith.constant 0 : index
    %c0_99 = arith.constant 0 : index
    %c2_100 = arith.constant 2 : index
    %c0_101 = arith.constant 0 : index
    %59 = tpu.strided_load %arg5[%c0_97, %c0_98, %c0_99, %c2_100, %c0_101] {strides = array<i32: 1, 1, 2, 2, 1>} : memref<1x1x17x17x4xf32, #tpu.memory_space<vmem>>, vector<1x1x8x8x4xf32>
    %60 = vector.shape_cast %59 : vector<1x1x8x8x4xf32> to vector<8x8x4xf32>
    %61 = arith.maximumf %58, %60 : vector<8x8x4xf32>
    %c0_102 = arith.constant 0 : index
    %c0_103 = arith.constant 0 : index
    %c1_104 = arith.constant 1 : index
    %c0_105 = arith.constant 0 : index
    %c0_106 = arith.constant 0 : index
    %62 = tpu.strided_load %arg5[%c0_102, %c0_103, %c1_104, %c0_105, %c0_106] {strides = array<i32: 1, 1, 2, 2, 1>} : memref<1x1x17x17x4xf32, #tpu.memory_space<vmem>>, vector<1x1x8x8x4xf32>
    %63 = vector.shape_cast %62 : vector<1x1x8x8x4xf32> to vector<8x8x4xf32>
    %64 = arith.maximumf %61, %63 : vector<8x8x4xf32>
    %c0_107 = arith.constant 0 : index
    %c0_108 = arith.constant 0 : index
    %c1_109 = arith.constant 1 : index
    %c1_110 = arith.constant 1 : index
    %c0_111 = arith.constant 0 : index
    %65 = tpu.strided_load %arg5[%c0_107, %c0_108, %c1_109, %c1_110, %c0_111] {strides = array<i32: 1, 1, 2, 2, 1>} : memref<1x1x17x17x4xf32, #tpu.memory_space<vmem>>, vector<1x1x8x8x4xf32>
    %66 = vector.shape_cast %65 : vector<1x1x8x8x4xf32> to vector<8x8x4xf32>
    %67 = arith.maximumf %64, %66 : vector<8x8x4xf32>
    %c0_112 = arith.constant 0 : index
    %c0_113 = arith.constant 0 : index
    %c1_114 = arith.constant 1 : index
    %c2_115 = arith.constant 2 : index
    %c0_116 = arith.constant 0 : index
    %68 = tpu.strided_load %arg5[%c0_112, %c0_113, %c1_114, %c2_115, %c0_116] {strides = array<i32: 1, 1, 2, 2, 1>} : memref<1x1x17x17x4xf32, #tpu.memory_space<vmem>>, vector<1x1x8x8x4xf32>
    %69 = vector.shape_cast %68 : vector<1x1x8x8x4xf32> to vector<8x8x4xf32>
    %70 = arith.maximumf %67, %69 : vector<8x8x4xf32>
    %c0_117 = arith.constant 0 : index
    %c0_118 = arith.constant 0 : index
    %c2_119 = arith.constant 2 : index
    %c0_120 = arith.constant 0 : index
    %c0_121 = arith.constant 0 : index
    %71 = tpu.strided_load %arg5[%c0_117, %c0_118, %c2_119, %c0_120, %c0_121] {strides = array<i32: 1, 1, 2, 2, 1>} : memref<1x1x17x17x4xf32, #tpu.memory_space<vmem>>, vector<1x1x8x8x4xf32>
    %72 = vector.shape_cast %71 : vector<1x1x8x8x4xf32> to vector<8x8x4xf32>
    %73 = arith.maximumf %70, %72 : vector<8x8x4xf32>
    %c0_122 = arith.constant 0 : index
    %c0_123 = arith.constant 0 : index
    %c2_124 = arith.constant 2 : index
    %c1_125 = arith.constant 1 : index
    %c0_126 = arith.constant 0 : index
    %74 = tpu.strided_load %arg5[%c0_122, %c0_123, %c2_124, %c1_125, %c0_126] {strides = array<i32: 1, 1, 2, 2, 1>} : memref<1x1x17x17x4xf32, #tpu.memory_space<vmem>>, vector<1x1x8x8x4xf32>
    %75 = vector.shape_cast %74 : vector<1x1x8x8x4xf32> to vector<8x8x4xf32>
    %76 = arith.maximumf %73, %75 : vector<8x8x4xf32>
    %c0_127 = arith.constant 0 : index
    %c0_128 = arith.constant 0 : index
    %c2_129 = arith.constant 2 : index
    %c2_130 = arith.constant 2 : index
    %c0_131 = arith.constant 0 : index
    %77 = tpu.strided_load %arg5[%c0_127, %c0_128, %c2_129, %c2_130, %c0_131] {strides = array<i32: 1, 1, 2, 2, 1>} : memref<1x1x17x17x4xf32, #tpu.memory_space<vmem>>, vector<1x1x8x8x4xf32>
    %78 = vector.shape_cast %77 : vector<1x1x8x8x4xf32> to vector<8x8x4xf32>
    %79 = arith.maximumf %76, %78 : vector<8x8x4xf32>
    %c0_132 = arith.constant 0 : index
    %c0_133 = arith.constant 0 : index
    %c0_134 = arith.constant 0 : index
    %c0_135 = arith.constant 0 : index
    %c0_136 = arith.constant 0 : index
    %80 = vector.load %arg6[%c0_132, %c0_133, %c0_134, %c0_135, %c0_136] : memref<1x1x8x8x4xf32, #tpu.memory_space<vmem>>, vector<1x1x8x8x4xf32>
    %81 = vector.shape_cast %80 : vector<1x1x8x8x4xf32> to vector<8x8x4xf32>
    %82 = vector.shape_cast %79 : vector<8x8x4xf32> to vector<1x1x8x8x4xf32>
    tpu.vector_store %arg6[%c0_132, %c0_133, %c0_134, %c0_135, %c0_136], %82 {strides = array<i32>} : memref<1x1x8x8x4xf32, #tpu.memory_space<vmem>>, vector<1x1x8x8x4xf32>,
    return
  }
  func.func @transform_0(%arg0: i32, %arg1: i32, %arg2: i32) -> (i32, i32, i32, i32, i32) {
    %c2_i32 = arith.constant 2 : i32
    %0 = arith.muli %arg2, %c2_i32 : i32
    %c0_i32 = arith.constant 0 : i32
    %1 = arith.addi %0, %c0_i32 : i32
    %c0_i32_0 = arith.constant 0 : i32
    %c0_i32_1 = arith.constant 0 : i32
    %c0_i32_2 = arith.constant 0 : i32
    return %arg0, %1, %c0_i32_0, %c0_i32_1, %arg1 : i32, i32, i32, i32, i32
  }
  func.func @transform_1(%arg0: i32, %arg1: i32, %arg2: i32) -> (i32, i32, i32, i32, i32) {
    %c2_i32 = arith.constant 2 : i32
    %0 = arith.muli %arg2, %c2_i32 : i32
    %c1_i32 = arith.constant 1 : i32
    %1 = arith.addi %0, %c1_i32 : i32
    %c0_i32 = arith.constant 0 : i32
    %c0_i32_0 = arith.constant 0 : i32
    %c0_i32_1 = arith.constant 0 : i32
    return %arg0, %1, %c0_i32, %c0_i32_0, %arg1 : i32, i32, i32, i32, i32
  }
  func.func @transform_2(%arg0: i32, %arg1: i32, %arg2: i32) -> (i32, i32, i32, i32, i32) {
    %c2_i32 = arith.constant 2 : i32
    %0 = arith.muli %arg2, %c2_i32 : i32
    %c2_i32_0 = arith.constant 2 : i32
    %1 = arith.addi %0, %c2_i32_0 : i32
    %c0_i32 = arith.constant 0 : i32
    %c0_i32_1 = arith.constant 0 : i32
    %c0_i32_2 = arith.constant 0 : i32
    return %arg0, %1, %c0_i32, %c0_i32_1, %arg1 : i32, i32, i32, i32, i32
  }
  func.func @transform_3(%arg0: i32, %arg1: i32, %arg2: i32) -> (i32, i32, i32, i32, i32) {
    %c0_i32 = arith.constant 0 : i32
    %c0_i32_0 = arith.constant 0 : i32
    %c0_i32_1 = arith.constant 0 : i32
    return %arg0, %arg2, %c0_i32, %c0_i32_0, %arg1 : i32, i32, i32, i32, i32
  }
}

</mosaic_0001>

<llo_original>
// kernel: tpu_custom_call.1
$region0: #{tpu_custom_call.1}
  #allocation0 [shape = 'u32[]', space=smem, size = 0x4, offset = 0x4, fixed_abs, tag = 'smem constant byte address 0x4 - core index']
  #allocation1 [shape = 'u32[144,128]{1,0:T(1,128)}', space=vmem, size = 0x12000, scoped, tag = 'internal scratch']
  %s0 = inlined_call_operand.vmem [shape: f32[2,9,17,17,4], index: 0, kind: input, shape index: {}]
  %s1 = inlined_call_operand.vmem [shape: f32[2,9,17,17,4], index: 1, kind: input, shape index: {}]
  %s2 = inlined_call_operand.vmem [shape: f32[2,9,17,17,4], index: 2, kind: input, shape index: {}]
  %s3 = inlined_call_operand.vmem [shape: f32[2,4,8,8,4], index: 3, kind: output, shape index: {}]
  %s4 = sld [smem:[#allocation0]]
  $region45: #{tpu_custom_call.1} parent=0
    _
  %s6 = ssub.s32 1, %s4
  %s7 = scalar_select 0, %s6, %s4
  loop: start=0, step=1, limit=10
  $region2: #{tpu_custom_call.1} parent=0 // loop_pre_header
    _
  $region3: #{tpu_custom_call.1} parent=0 // loop_header
    %s9 = sphi 0, %s13
    %p10 = scmp.ge.s32.totalorder %s9, 10
    %s16 = sphi 0, %s35
    %s17 = sphi 0, %s31
    %s18 = sphi 0, %s27
    %s19 = sphi 0, %s16
    %s20 = sphi 0, %s17
    %s21 = sphi 0, %s18
    %s22 = sphi 0, %s19
    %s23 = sphi 0, %s20
    %s24 = sphi 0, %s21
    %s44 = sphi 0, %s46
    %s47 = sphi 0, %s44
    %s48 = sphi 0, %s47
    %s64 = sphi 0, %s48
    %s78 = sphi 0, %s80
    %s81 = sphi 0, %s78
    %s82 = sphi 0, %s81
    %s98 = sphi 0, %s82
    %s112 = sphi 0, %s114
    %s115 = sphi 0, %s112
    %s116 = sphi 0, %s115
    %s132 = sphi 0, %s116
    %s142 = sphi 0, %s144
    %s145 = sphi 0, %s142
    %s146 = sphi 0, %s145
    %s162 = sphi 0, %s146
  $region4: #{tpu_custom_call.1} parent=0 // loop_header_branch
    %12 = sbr.rel (%p10) target = $region8
  $region5: #{tpu_custom_call.1} parent=0 // loop_body
    %s14 = ssub.s32 %s9, 1
    %s15 = ssub.s32 %s9, 2
    %s25 = sadd.s32 1, %s18
    %p26 = scmp.ge.s32.totalorder %s25, 4
    %s27 = scalar_select %p26, 0, %s25
    %s28 = sadd.s32 1, %s17
    %s29 = scalar_select %p26, %s28, %s17
    %p30 = scmp.ge.s32.totalorder %s29, 1
    %s31 = scalar_select %p30, 0, %s29
    %s32 = sadd.s32 1, %s16
    %s33 = scalar_select %p30, %s32, %s16
    %p34 = scmp.ge.s32.totalorder %s33, 2
    %s35 = scalar_select %p34, 0, %s33
    %s36 = smul.u32 %s18, 2
    %s37 = smul.u32 %s27, 2
    %s38 = ssub.s32 %s16, %s35
    %s39 = ssub.s32 %s36, %s37
    %s40 = sor.u32 %s38, %s39
    %s41 = ssub.s32 %s17, %s31
    %s42 = sor.u32 %s40, %s41
    %p43 = scmp.eq.s32.totalorder %s42, 0
    %s45 = sadd.s32 %s44, 1
    %s46 = scalar_select %p43, %s44, %s45
    %p49 = pneg %p43
    %p50 = scmp.eq.s32.totalorder %s9, 7
    %p51 = por %p49, %p50
    %p52 = scmp.ne.s32.totalorder %s44, %s47
    %p53 = scmp.eq.s32.totalorder %s9, 0
    %p54 = por %p52, %p53
    %p55 = scmp.ne.s32.totalorder %s44, %s47
    %p56 = scmp.eq.s32.totalorder %s14, 7
    %p57 = por %p55, %p56
    %p58 = scmp.ne.s32.totalorder %s47, %s48
    %p59 = scmp.eq.s32.totalorder %s14, 0
    %p60 = por %p58, %p59
    %p61 = scmp.ne.s32.totalorder %s47, %s48
    %p62 = scmp.eq.s32.totalorder %s15, 7
    %p63 = por %p61, %p62
    %p65 = scmp.ne.s32.totalorder %s48, %s64
    %p66 = scmp.eq.s32.totalorder %s15, 0
    %p67 = por %p65, %p66
    %s68 = smul.u32 %s18, 2
    %s69 = sadd.s32 %s68, 1
    %s70 = smul.u32 %s27, 2
    %s71 = sadd.s32 %s70, 1
    %s72 = ssub.s32 %s16, %s35
    %s73 = ssub.s32 %s69, %s71
    %s74 = sor.u32 %s72, %s73
    %s75 = ssub.s32 %s17, %s31
    %s76 = sor.u32 %s74, %s75
    %p77 = scmp.eq.s32.totalorder %s76, 0
    %s79 = sadd.s32 %s78, 1
    %s80 = scalar_select %p77, %s78, %s79
    %p83 = pneg %p77
    %p84 = scmp.eq.s32.totalorder %s9, 7
    %p85 = por %p83, %p84
    %p86 = scmp.ne.s32.totalorder %s78, %s81
    %p87 = scmp.eq.s32.totalorder %s9, 0
    %p88 = por %p86, %p87
    %p89 = scmp.ne.s32.totalorder %s78, %s81
    %p90 = scmp.eq.s32.totalorder %s14, 7
    %p91 = por %p89, %p90
    %p92 = scmp.ne.s32.totalorder %s81, %s82
    %p93 = scmp.eq.s32.totalorder %s14, 0
    %p94 = por %p92, %p93
    %p95 = scmp.ne.s32.totalorder %s81, %s82
    %p96 = scmp.eq.s32.totalorder %s15, 7
    %p97 = por %p95, %p96
    %p99 = scmp.ne.s32.totalorder %s82, %s98
    %p100 = scmp.eq.s32.totalorder %s15, 0
    %p101 = por %p99, %p100
    %s102 = smul.u32 %s18, 2
    %s103 = sadd.s32 %s102, 2
    %s104 = smul.u32 %s27, 2
    %s105 = sadd.s32 %s104, 2
    %s106 = ssub.s32 %s16, %s35
    %s107 = ssub.s32 %s103, %s105
    %s108 = sor.u32 %s106, %s107
    %s109 = ssub.s32 %s17, %s31
    %s110 = sor.u32 %s108, %s109
    %p111 = scmp.eq.s32.totalorder %s110, 0
    %s113 = sadd.s32 %s112, 1
    %s114 = scalar_select %p111, %s112, %s113
    %p117 = pneg %p111
    %p118 = scmp.eq.s32.totalorder %s9, 7
    %p119 = por %p117, %p118
    %p120 = scmp.ne.s32.totalorder %s112, %s115
    %p121 = scmp.eq.s32.totalorder %s9, 0
    %p122 = por %p120, %p121
    %p123 = scmp.ne.s32.totalorder %s112, %s115
    %p124 = scmp.eq.s32.totalorder %s14, 7
    %p125 = por %p123, %p124
    %p126 = scmp.ne.s32.totalorder %s115, %s116
    %p127 = scmp.eq.s32.totalorder %s14, 0
    %p128 = por %p126, %p127
    %p129 = scmp.ne.s32.totalorder %s115, %s116
    %p130 = scmp.eq.s32.totalorder %s15, 7
    %p131 = por %p129, %p130
    %p133 = scmp.ne.s32.totalorder %s116, %s132
    %p134 = scmp.eq.s32.totalorder %s15, 0
    %p135 = por %p133, %p134
    %s136 = ssub.s32 %s16, %s35
    %s137 = ssub.s32 %s18, %s27
    %s138 = sor.u32 %s136, %s137
    %s139 = ssub.s32 %s17, %s31
    %s140 = sor.u32 %s138, %s139
    %p141 = scmp.eq.s32.totalorder %s140, 0
    %s143 = sadd.s32 %s142, 1
    %s144 = scalar_select %p141, %s142, %s143
    %p147 = pneg %p141
    %p148 = scmp.eq.s32.totalorder %s9, 7
    %p149 = por %p147, %p148
    %p150 = scmp.ne.s32.totalorder %s142, %s145
    %p151 = scmp.eq.s32.totalorder %s9, 0
    %p152 = por %p150, %p151
    %p153 = scmp.ne.s32.totalorder %s142, %s145
    %p154 = scmp.eq.s32.totalorder %s14, 7
    %p155 = por %p153, %p154
    %p156 = scmp.ne.s32.totalorder %s145, %s146
    %p157 = scmp.eq.s32.totalorder %s14, 0
    %p158 = por %p156, %p157
    %p159 = scmp.ne.s32.totalorder %s145, %s146
    %p160 = scmp.eq.s32.totalorder %s15, 7
    %p161 = por %p159, %p160
    %p163 = scmp.ne.s32.totalorder %s146, %s162
    %p164 = scmp.eq.s32.totalorder %s15, 0
    %p165 = por %p163, %p164
    %p166 = scmp.le.s32.totalorder 1, %s9
    %p167 = scmp.lt.s32.totalorder %s9, 9
    %p168 = pnand %p166, %p167
    %p169 = pneg %p168
    // Predicated region
    $region9: #{tpu_custom_call.1} parent=5 // pred_check
      _
    $region10: #{tpu_custom_call.1} parent=5 // pred_check_branch
      %171 = sbr.rel (%p168) target = $region12
    $region11: #{tpu_custom_call.1} parent=5 // pred_region
      %s172 = ssub.s32 %s9, 1
    $region12: #{tpu_custom_call.1} parent=5 // pred_fallthru
      _
    %p173 = scmp.lt.s32.totalorder %s9, 8
    // Predicated region
    $region13: #{tpu_custom_call.1} parent=5 // pred_check
      %p174 = pneg %p173
    $region14: #{tpu_custom_call.1} parent=5 // pred_check_branch
      %176 = sbr.rel (%p174) target = $region16
    $region15: #{tpu_custom_call.1} parent=5 // pred_region
      // Predicated region
      $region17: #{tpu_custom_call.1} parent=15 // pred_check
        %p177 = pneg %p54
      $region18: #{tpu_custom_call.1} parent=15 // pred_check_branch
        %179 = sbr.rel (%p177) target = $region20
      $region19: #{tpu_custom_call.1} parent=15 // pred_region
        %s180 = smul.u32 %s18, 2
        %p181 = scmp.lt.s32.totalorder %s16, 1
        %s182 = scalar_select %p181, %s16, 1
        %p183 = scmp.lt.s32.totalorder %s180, 8
        %s184 = scalar_select %p183, %s180, 8
        %p185 = scmp.lt.s32.totalorder %s17, 0
        %s186 = scalar_select %p185, %s17, 0
        %s187 = smul.addr %s184, 51
        %s188 = sadd.s32 %s186, %s187
        %s189 = smul.addr %s182, 459
        %s190 = sadd.s32 %s188, %s189
        %s191 = smul.addr %s190, 8
        %s192 = scalar_lea.vmem %s0, %s191
        %s193 = smul.u32 %s18, 2
      $region20: #{tpu_custom_call.1} parent=15 // pred_fallthru
        _
      // Predicated region
      $region21: #{tpu_custom_call.1} parent=15 // pred_check
        %p194 = pneg %p88
      $region22: #{tpu_custom_call.1} parent=15 // pred_check_branch
        %196 = sbr.rel (%p194) target = $region24
      $region23: #{tpu_custom_call.1} parent=15 // pred_region
        %s197 = smul.u32 %s18, 2
        %s198 = sadd.s32 %s197, 1
        %p199 = scmp.lt.s32.totalorder %s16, 1
        %s200 = scalar_select %p199, %s16, 1
        %p201 = scmp.lt.s32.totalorder %s198, 8
        %s202 = scalar_select %p201, %s198, 8
        %p203 = scmp.lt.s32.totalorder %s17, 0
        %s204 = scalar_select %p203, %s17, 0
        %s205 = smul.addr %s202, 51
        %s206 = sadd.s32 %s204, %s205
        %s207 = smul.addr %s200, 459
        %s208 = sadd.s32 %s206, %s207
        %s209 = smul.addr %s208, 8
        %s210 = scalar_lea.vmem %s1, %s209
        %s211 = smul.u32 %s18, 2
        %s212 = sadd.s32 %s211, 1
      $region24: #{tpu_custom_call.1} parent=15 // pred_fallthru
        _
      // Predicated region
      $region25: #{tpu_custom_call.1} parent=15 // pred_check
        %p213 = pneg %p122
      $region26: #{tpu_custom_call.1} parent=15 // pred_check_branch
        %215 = sbr.rel (%p213) target = $region28
      $region27: #{tpu_custom_call.1} parent=15 // pred_region
        %s216 = smul.u32 %s18, 2
        %s217 = sadd.s32 %s216, 2
        %p218 = scmp.lt.s32.totalorder %s16, 1
        %s219 = scalar_select %p218, %s16, 1
        %p220 = scmp.lt.s32.totalorder %s217, 8
        %s221 = scalar_select %p220, %s217, 8
        %p222 = scmp.lt.s32.totalorder %s17, 0
        %s223 = scalar_select %p222, %s17, 0
        %s224 = smul.addr %s221, 51
        %s225 = sadd.s32 %s223, %s224
        %s226 = smul.addr %s219, 459
        %s227 = sadd.s32 %s225, %s226
        %s228 = smul.addr %s227, 8
        %s229 = scalar_lea.vmem %s2, %s228
        %s230 = smul.u32 %s18, 2
        %s231 = sadd.s32 %s230, 2
      $region28: #{tpu_custom_call.1} parent=15 // pred_fallthru
        _
    $region16: #{tpu_custom_call.1} parent=5 // pred_fallthru
      _
    %p232 = scmp.le.s32.totalorder 1, %s9
    %p233 = scmp.lt.s32.totalorder %s9, 9
    %p234 = pnand %p232, %p233
    %p235 = pneg %p234
    // Predicated region
    $region29: #{tpu_custom_call.1} parent=5 // pred_check
      _
    $region30: #{tpu_custom_call.1} parent=5 // pred_check_branch
      %237 = sbr.rel (%p234) target = $region32
    $region31: #{tpu_custom_call.1} parent=5 // pred_region
      %s238 = ssub.s32 %s9, 1
      %s239 = smul.u32 %s21, 2
      %p240 = scmp.lt.s32.totalorder %s19, 1
      %s241 = scalar_select %p240, %s19, 1
      %p242 = scmp.lt.s32.totalorder %s239, 8
      %s243 = scalar_select %p242, %s239, 8
      %p244 = scmp.lt.s32.totalorder %s20, 0
      %s245 = scalar_select %p244, %s20, 0
      %s246 = smul.addr %s243, 51
      %s247 = sadd.s32 %s245, %s246
      %s248 = smul.addr %s241, 459
      %s249 = sadd.s32 %s247, %s248
      %s250 = smul.addr %s249, 8
      %s251 = scalar_lea.vmem %s0, %s250
      %p252 = pneg %p60
      %p253 = pneg %p57
      %s254 = smul.u32 %s21, 2
      %s255 = sadd.s32 %s254, 1
      %p256 = scmp.lt.s32.totalorder %s19, 1
      %s257 = scalar_select %p256, %s19, 1
      %p258 = scmp.lt.s32.totalorder %s255, 8
      %s259 = scalar_select %p258, %s255, 8
      %p260 = scmp.lt.s32.totalorder %s20, 0
      %s261 = scalar_select %p260, %s20, 0
      %s262 = smul.addr %s259, 51
      %s263 = sadd.s32 %s261, %s262
      %s264 = smul.addr %s257, 459
      %s265 = sadd.s32 %s263, %s264
      %s266 = smul.addr %s265, 8
      %s267 = scalar_lea.vmem %s1, %s266
      %p268 = pneg %p94
      %p269 = pneg %p91
      %s270 = smul.u32 %s21, 2
      %s271 = sadd.s32 %s270, 2
      %p272 = scmp.lt.s32.totalorder %s19, 1
      %s273 = scalar_select %p272, %s19, 1
      %p274 = scmp.lt.s32.totalorder %s271, 8
      %s275 = scalar_select %p274, %s271, 8
      %p276 = scmp.lt.s32.totalorder %s20, 0
      %s277 = scalar_select %p276, %s20, 0
      %s278 = smul.addr %s275, 51
      %s279 = sadd.s32 %s277, %s278
      %s280 = smul.addr %s273, 459
      %s281 = sadd.s32 %s279, %s280
      %s282 = smul.addr %s281, 8
      %s283 = scalar_lea.vmem %s2, %s282
      %p284 = pneg %p128
      %p285 = pneg %p125
      %p286 = pneg %p158
      %p287 = pneg %p155
      %p288 = scmp.lt.s32.totalorder %s19, 1
      %s289 = scalar_select %p288, %s19, 1
      %p290 = scmp.lt.s32.totalorder %s21, 3
      %s291 = scalar_select %p290, %s21, 3
      %p292 = scmp.lt.s32.totalorder %s20, 0
      %s293 = scalar_select %p292, %s20, 0
      %s294 = smul.addr %s291, 8
      %s295 = sadd.s32 %s293, %s294
      %s296 = smul.addr %s289, 32
      %s297 = sadd.s32 %s295, %s296
      %s298 = smul.addr %s297, 8
      %s299 = scalar_lea.vmem %s3, %s298
      %s300 = smul.u32 %s21, 2
      %p301 = scmp.lt.s32.totalorder %s19, 1
      %s302 = scalar_select %p301, %s19, 1
      %p303 = scmp.lt.s32.totalorder %s300, 8
      %s304 = scalar_select %p303, %s300, 8
      %p305 = scmp.lt.s32.totalorder %s20, 0
      %s306 = scalar_select %p305, %s20, 0
      %s307 = smul.addr %s304, 51
      %s308 = sadd.s32 %s306, %s307
      %s309 = smul.addr %s302, 459
      %s310 = sadd.s32 %s308, %s309
      %s311 = smul.addr %s310, 8
      %s312 = scalar_lea.vmem %s0, %s311
      %s313 = smul.u32 %s21, 2
      %s314 = smul.u32 %s21, 2
      %s315 = sadd.s32 %s314, 1
      %p316 = scmp.lt.s32.totalorder %s19, 1
      %s317 = scalar_select %p316, %s19, 1
      %p318 = scmp.lt.s32.totalorder %s315, 8
      %s319 = scalar_select %p318, %s315, 8
      %p320 = scmp.lt.s32.totalorder %s20, 0
      %s321 = scalar_select %p320, %s20, 0
      %s322 = smul.addr %s319, 51
      %s323 = sadd.s32 %s321, %s322
      %s324 = smul.addr %s317, 459
      %s325 = sadd.s32 %s323, %s324
      %s326 = smul.addr %s325, 8
      %s327 = scalar_lea.vmem %s1, %s326
      %s328 = smul.u32 %s21, 2
      %s329 = sadd.s32 %s328, 1
      %s330 = smul.u32 %s21, 2
      %s331 = sadd.s32 %s330, 2
      %p332 = scmp.lt.s32.totalorder %s19, 1
      %s333 = scalar_select %p332, %s19, 1
      %p334 = scmp.lt.s32.totalorder %s331, 8
      %s335 = scalar_select %p334, %s331, 8
      %p336 = scmp.lt.s32.totalorder %s20, 0
      %s337 = scalar_select %p336, %s20, 0
      %s338 = smul.addr %s335, 51
      %s339 = sadd.s32 %s337, %s338
      %s340 = smul.addr %s333, 459
      %s341 = sadd.s32 %s339, %s340
      %s342 = smul.addr %s341, 8
      %s343 = scalar_lea.vmem %s2, %s342
      %s344 = smul.u32 %s21, 2
      %s345 = sadd.s32 %s344, 2
      %p346 = scmp.lt.s32.totalorder %s19, 1
      %s347 = scalar_select %p346, %s19, 1
      %p348 = scmp.lt.s32.totalorder %s21, 3
      %s349 = scalar_select %p348, %s21, 3
      %p350 = scmp.lt.s32.totalorder %s20, 0
      %s351 = scalar_select %p350, %s20, 0
      %s352 = smul.addr %s349, 8
      %s353 = sadd.s32 %s351, %s352
      %s354 = smul.addr %s347, 32
      %s355 = sadd.s32 %s353, %s354
      %s356 = smul.addr %s355, 8
      %s357 = scalar_lea.vmem %s3, %s356
      %v358 = vld [vmem:[%s312] ss:$2 sm:$0xff]
      %s359 = scalar_lea.vmem %s312, 48
      %v360 = vld [vmem:[%s359] ss:$2 sm:$0xff]
      %s361 = scalar_lea.vmem %s312, 96
      %v362 = vld [vmem:[%s361] ss:$2 sm:$0xff]
      %s363 = scalar_lea.vmem %s312, 144
      %v364 = vld [vmem:[%s363] ss:$2 sm:$0xff]
      %s365 = scalar_lea.vmem %s312, 192
      %v366 = vld [vmem:[%s365] ss:$2 sm:$0xff]
      %s367 = scalar_lea.vmem %s312, 240
      %v368 = vld [vmem:[%s367] ss:$2 sm:$0xff]
      %s369 = scalar_lea.vmem %s312, 288
      %v370 = vld [vmem:[%s369] ss:$2 sm:$0xff]
      %s371 = scalar_lea.vmem %s312, 336
      %v372 = vld [vmem:[%s371] ss:$2 sm:$0xff]
      %s373 = scalar_lea.vmem %s312, 1
      %v374 = vld [vmem:[%s373] ss:$2 sm:$0xff]
      %s375 = scalar_lea.vmem %s312, 49
      %v376 = vld [vmem:[%s375] ss:$2 sm:$0xff]
      %s377 = scalar_lea.vmem %s312, 97
      %v378 = vld [vmem:[%s377] ss:$2 sm:$0xff]
      %s379 = scalar_lea.vmem %s312, 145
      %v380 = vld [vmem:[%s379] ss:$2 sm:$0xff]
      %s381 = scalar_lea.vmem %s312, 193
      %v382 = vld [vmem:[%s381] ss:$2 sm:$0xff]
      %s383 = scalar_lea.vmem %s312, 241
      %v384 = vld [vmem:[%s383] ss:$2 sm:$0xff]
      %s385 = scalar_lea.vmem %s312, 289
      %v386 = vld [vmem:[%s385] ss:$2 sm:$0xff]
      %s387 = scalar_lea.vmem %s312, 337
      %v388 = vld [vmem:[%s387] ss:$2 sm:$0xff]
      %v389 = vmax.f32 %v358, %v374
      %v390 = vmax.f32 %v360, %v376
      %v391 = vmax.f32 %v362, %v378
      %v392 = vmax.f32 %v364, %v380
      %v393 = vmax.f32 %v366, %v382
      %v394 = vmax.f32 %v368, %v384
      %v395 = vmax.f32 %v370, %v386
      %v396 = vmax.f32 %v372, %v388
      %s397 = scalar_lea.vmem %s312, 2
      %v398 = vld [vmem:[%s397] ss:$2 sm:$0xff]
      %s399 = scalar_lea.vmem %s312, 50
      %v400 = vld [vmem:[%s399] ss:$2 sm:$0xff]
      %s401 = scalar_lea.vmem %s312, 98
      %v402 = vld [vmem:[%s401] ss:$2 sm:$0xff]
      %s403 = scalar_lea.vmem %s312, 146
      %v404 = vld [vmem:[%s403] ss:$2 sm:$0xff]
      %s405 = scalar_lea.vmem %s312, 194
      %v406 = vld [vmem:[%s405] ss:$2 sm:$0xff]
      %s407 = scalar_lea.vmem %s312, 242
      %v408 = vld [vmem:[%s407] ss:$2 sm:$0xff]
      %s409 = scalar_lea.vmem %s312, 290
      %v410 = vld [vmem:[%s409] ss:$2 sm:$0xff]
      %s411 = scalar_lea.vmem %s312, 338
      %v412 = vld [vmem:[%s411] ss:$2 sm:$0xff]
      %v413 = vmax.f32 %v389, %v398
      %v414 = vmax.f32 %v390, %v400
      %v415 = vmax.f32 %v391, %v402
      %v416 = vmax.f32 %v392, %v404
      %v417 = vmax.f32 %v393, %v406
      %v418 = vmax.f32 %v394, %v408
      %v419 = vmax.f32 %v395, %v410
      %v420 = vmax.f32 %v396, %v412
      %s421 = scalar_lea.vmem %s312, 24
      %v422 = vld [vmem:[%s421] ss:$2 sm:$0xff]
      %s423 = scalar_lea.vmem %s421, 48
      %v424 = vld [vmem:[%s423] ss:$2 sm:$0xff]
      %s425 = scalar_lea.vmem %s421, 96
      %v426 = vld [vmem:[%s425] ss:$2 sm:$0xff]
      %s427 = scalar_lea.vmem %s421, 144
      %v428 = vld [vmem:[%s427] ss:$2 sm:$0xff]
      %s429 = scalar_lea.vmem %s421, 192
      %v430 = vld [vmem:[%s429] ss:$2 sm:$0xff]
      %s431 = scalar_lea.vmem %s421, 240
      %v432 = vld [vmem:[%s431] ss:$2 sm:$0xff]
      %s433 = scalar_lea.vmem %s421, 288
      %v434 = vld [vmem:[%s433] ss:$2 sm:$0xff]
      %s435 = scalar_lea.vmem %s421, 336
      %v436 = vld [vmem:[%s435] ss:$2 sm:$0xff]
      %v437 = vmax.f32 %v413, %v422
      %v438 = vmax.f32 %v414, %v424
      %v439 = vmax.f32 %v415, %v426
      %v440 = vmax.f32 %v416, %v428
      %v441 = vmax.f32 %v417, %v430
      %v442 = vmax.f32 %v418, %v432
      %v443 = vmax.f32 %v419, %v434
      %v444 = vmax.f32 %v420, %v436
      %s445 = scalar_lea.vmem %s421, 1
      %v446 = vld [vmem:[%s445] ss:$2 sm:$0xff]
      %s447 = scalar_lea.vmem %s421, 49
      %v448 = vld [vmem:[%s447] ss:$2 sm:$0xff]
      %s449 = scalar_lea.vmem %s421, 97
      %v450 = vld [vmem:[%s449] ss:$2 sm:$0xff]
      %s451 = scalar_lea.vmem %s421, 145
      %v452 = vld [vmem:[%s451] ss:$2 sm:$0xff]
      %s453 = scalar_lea.vmem %s421, 193
      %v454 = vld [vmem:[%s453] ss:$2 sm:$0xff]
      %s455 = scalar_lea.vmem %s421, 241
      %v456 = vld [vmem:[%s455] ss:$2 sm:$0xff]
      %s457 = scalar_lea.vmem %s421, 289
      %v458 = vld [vmem:[%s457] ss:$2 sm:$0xff]
      %s459 = scalar_lea.vmem %s421, 337
      %v460 = vld [vmem:[%s459] ss:$2 sm:$0xff]
      %v461 = vmax.f32 %v437, %v446
      %v462 = vmax.f32 %v438, %v448
      %v463 = vmax.f32 %v439, %v450
      %v464 = vmax.f32 %v440, %v452
      %v465 = vmax.f32 %v441, %v454
      %v466 = vmax.f32 %v442, %v456
      %v467 = vmax.f32 %v443, %v458
      %v468 = vmax.f32 %v444, %v460
      %s469 = scalar_lea.vmem %s421, 2
      %v470 = vld [vmem:[%s469] ss:$2 sm:$0xff]
      %s471 = scalar_lea.vmem %s421, 50
      %v472 = vld [vmem:[%s471] ss:$2 sm:$0xff]
      %s473 = scalar_lea.vmem %s421, 98
      %v474 = vld [vmem:[%s473] ss:$2 sm:$0xff]
      %s475 = scalar_lea.vmem %s421, 146
      %v476 = vld [vmem:[%s475] ss:$2 sm:$0xff]
      %s477 = scalar_lea.vmem %s421, 194
      %v478 = vld [vmem:[%s477] ss:$2 sm:$0xff]
      %s479 = scalar_lea.vmem %s421, 242
      %v480 = vld [vmem:[%s479] ss:$2 sm:$0xff]
      %s481 = scalar_lea.vmem %s421, 290
      %v482 = vld [vmem:[%s481] ss:$2 sm:$0xff]
      %s483 = scalar_lea.vmem %s421, 338
      %v484 = vld [vmem:[%s483] ss:$2 sm:$0xff]
      %v485 = vmax.f32 %v461, %v470
      %v486 = vmax.f32 %v462, %v472
      %v487 = vmax.f32 %v463, %v474
      %v488 = vmax.f32 %v464, %v476
      %v489 = vmax.f32 %v465, %v478
      %v490 = vmax.f32 %v466, %v480
      %v491 = vmax.f32 %v467, %v482
      %v492 = vmax.f32 %v468, %v484
      %s493 = scalar_lea.vmem %s312, 48
      %v494 = vld [vmem:[%s493] ss:$2 sm:$0xff]
      %s495 = scalar_lea.vmem %s493, 48
      %v496 = vld [vmem:[%s495] ss:$2 sm:$0xff]
      %s497 = scalar_lea.vmem %s493, 96
      %v498 = vld [vmem:[%s497] ss:$2 sm:$0xff]
      %s499 = scalar_lea.vmem %s493, 144
      %v500 = vld [vmem:[%s499] ss:$2 sm:$0xff]
      %s501 = scalar_lea.vmem %s493, 192
      %v502 = vld [vmem:[%s501] ss:$2 sm:$0xff]
      %s503 = scalar_lea.vmem %s493, 240
      %v504 = vld [vmem:[%s503] ss:$2 sm:$0xff]
      %s505 = scalar_lea.vmem %s493, 288
      %v506 = vld [vmem:[%s505] ss:$2 sm:$0xff]
      %s507 = scalar_lea.vmem %s493, 336
      %v508 = vld [vmem:[%s507] ss:$2 sm:$0xff]
      %v509 = vmax.f32 %v485, %v494
      %v510 = vmax.f32 %v486, %v496
      %v511 = vmax.f32 %v487, %v498
      %v512 = vmax.f32 %v488, %v500
      %v513 = vmax.f32 %v489, %v502
      %v514 = vmax.f32 %v490, %v504
      %v515 = vmax.f32 %v491, %v506
      %v516 = vmax.f32 %v492, %v508
      %s517 = scalar_lea.vmem %s493, 1
      %v518 = vld [vmem:[%s517] ss:$2 sm:$0xff]
      %s519 = scalar_lea.vmem %s493, 49
      %v520 = vld [vmem:[%s519] ss:$2 sm:$0xff]
      %s521 = scalar_lea.vmem %s493, 97
      %v522 = vld [vmem:[%s521] ss:$2 sm:$0xff]
      %s523 = scalar_lea.vmem %s493, 145
      %v524 = vld [vmem:[%s523] ss:$2 sm:$0xff]
      %s525 = scalar_lea.vmem %s493, 193
      %v526 = vld [vmem:[%s525] ss:$2 sm:$0xff]
      %s527 = scalar_lea.vmem %s493, 241
      %v528 = vld [vmem:[%s527] ss:$2 sm:$0xff]
      %s529 = scalar_lea.vmem %s493, 289
      %v530 = vld [vmem:[%s529] ss:$2 sm:$0xff]
      %s531 = scalar_lea.vmem %s493, 337
      %v532 = vld [vmem:[%s531] ss:$2 sm:$0xff]
      %v533 = vmax.f32 %v509, %v518
      %v534 = vmax.f32 %v510, %v520
      %v535 = vmax.f32 %v511, %v522
      %v536 = vmax.f32 %v512, %v524
      %v537 = vmax.f32 %v513, %v526
      %v538 = vmax.f32 %v514, %v528
      %v539 = vmax.f32 %v515, %v530
      %v540 = vmax.f32 %v516, %v532
      %s541 = scalar_lea.vmem %s493, 2
      %v542 = vld [vmem:[%s541] ss:$2 sm:$0xff]
      %s543 = scalar_lea.vmem %s493, 50
      %v544 = vld [vmem:[%s543] ss:$2 sm:$0xff]
      %s545 = scalar_lea.vmem %s493, 98
      %v546 = vld [vmem:[%s545] ss:$2 sm:$0xff]
      %s547 = scalar_lea.vmem %s493, 146
      %v548 = vld [vmem:[%s547] ss:$2 sm:$0xff]
      %s549 = scalar_lea.vmem %s493, 194
      %v550 = vld [vmem:[%s549] ss:$2 sm:$0xff]
      %s551 = scalar_lea.vmem %s493, 242
      %v552 = vld [vmem:[%s551] ss:$2 sm:$0xff]
      %s553 = scalar_lea.vmem %s493, 290
      %v554 = vld [vmem:[%s553] ss:$2 sm:$0xff]
      %s555 = scalar_lea.vmem %s493, 338
      %v556 = vld [vmem:[%s555] ss:$2 sm:$0xff]
      %v557 = vmax.f32 %v533, %v542
      %v558 = vmax.f32 %v534, %v544
      %v559 = vmax.f32 %v535, %v546
      %v560 = vmax.f32 %v536, %v548
      %v561 = vmax.f32 %v537, %v550
      %v562 = vmax.f32 %v538, %v552
      %v563 = vmax.f32 %v539, %v554
      %v564 = vmax.f32 %v540, %v556
      %v565 = vld [vmem:[%s327] ss:$2 sm:$0xff]
      %s566 = scalar_lea.vmem %s327, 48
      %v567 = vld [vmem:[%s566] ss:$2 sm:$0xff]
      %s568 = scalar_lea.vmem %s327, 96
      %v569 = vld [vmem:[%s568] ss:$2 sm:$0xff]
      %s570 = scalar_lea.vmem %s327, 144
      %v571 = vld [vmem:[%s570] ss:$2 sm:$0xff]
      %s572 = scalar_lea.vmem %s327, 192
      %v573 = vld [vmem:[%s572] ss:$2 sm:$0xff]
      %s574 = scalar_lea.vmem %s327, 240
      %v575 = vld [vmem:[%s574] ss:$2 sm:$0xff]
      %s576 = scalar_lea.vmem %s327, 288
      %v577 = vld [vmem:[%s576] ss:$2 sm:$0xff]
      %s578 = scalar_lea.vmem %s327, 336
      %v579 = vld [vmem:[%s578] ss:$2 sm:$0xff]
      %v580 = vmax.f32 %v557, %v565
      %v581 = vmax.f32 %v558, %v567
      %v582 = vmax.f32 %v559, %v569
      %v583 = vmax.f32 %v560, %v571
      %v584 = vmax.f32 %v561, %v573
      %v585 = vmax.f32 %v562, %v575
      %v586 = vmax.f32 %v563, %v577
      %v587 = vmax.f32 %v564, %v579
      %s588 = scalar_lea.vmem %s327, 1
      %v589 = vld [vmem:[%s588] ss:$2 sm:$0xff]
      %s590 = scalar_lea.vmem %s327, 49
      %v591 = vld [vmem:[%s590] ss:$2 sm:$0xff]
      %s592 = scalar_lea.vmem %s327, 97
      %v593 = vld [vmem:[%s592] ss:$2 sm:$0xff]
      %s594 = scalar_lea.vmem %s327, 145
      %v595 = vld [vmem:[%s594] ss:$2 sm:$0xff]
      %s596 = scalar_lea.vmem %s327, 193
      %v597 = vld [vmem:[%s596] ss:$2 sm:$0xff]
      %s598 = scalar_lea.vmem %s327, 241
      %v599 = vld [vmem:[%s598] ss:$2 sm:$0xff]
      %s600 = scalar_lea.vmem %s327, 289
      %v601 = vld [vmem:[%s600] ss:$2 sm:$0xff]
      %s602 = scalar_lea.vmem %s327, 337
      %v603 = vld [vmem:[%s602] ss:$2 sm:$0xff]
      %v604 = vmax.f32 %v580, %v589
      %v605 = vmax.f32 %v581, %v591
      %v606 = vmax.f32 %v582, %v593
      %v607 = vmax.f32 %v583, %v595
      %v608 = vmax.f32 %v584, %v597
      %v609 = vmax.f32 %v585, %v599
      %v610 = vmax.f32 %v586, %v601
      %v611 = vmax.f32 %v587, %v603
      %s612 = scalar_lea.vmem %s327, 2
      %v613 = vld [vmem:[%s612] ss:$2 sm:$0xff]
      %s614 = scalar_lea.vmem %s327, 50
      %v615 = vld [vmem:[%s614] ss:$2 sm:$0xff]
      %s616 = scalar_lea.vmem %s327, 98
      %v617 = vld [vmem:[%s616] ss:$2 sm:$0xff]
      %s618 = scalar_lea.vmem %s327, 146
      %v619 = vld [vmem:[%s618] ss:$2 sm:$0xff]
      %s620 = scalar_lea.vmem %s327, 194
      %v621 = vld [vmem:[%s620] ss:$2 sm:$0xff]
      %s622 = scalar_lea.vmem %s327, 242
      %v623 = vld [vmem:[%s622] ss:$2 sm:$0xff]
      %s624 = scalar_lea.vmem %s327, 290
      %v625 = vld [vmem:[%s624] ss:$2 sm:$0xff]
      %s626 = scalar_lea.vmem %s327, 338
      %v627 = vld [vmem:[%s626] ss:$2 sm:$0xff]
      %v628 = vmax.f32 %v604, %v613
      %v629 = vmax.f32 %v605, %v615
      %v630 = vmax.f32 %v606, %v617
      %v631 = vmax.f32 %v607, %v619
      %v632 = vmax.f32 %v608, %v621
      %v633 = vmax.f32 %v609, %v623
      %v634 = vmax.f32 %v610, %v625
      %v635 = vmax.f32 %v611, %v627
      %s636 = scalar_lea.vmem %s327, 24
      %v637 = vld [vmem:[%s636] ss:$2 sm:$0xff]
      %s638 = scalar_lea.vmem %s636, 48
      %v639 = vld [vmem:[%s638] ss:$2 sm:$0xff]
      %s640 = scalar_lea.vmem %s636, 96
      %v641 = vld [vmem:[%s640] ss:$2 sm:$0xff]
      %s642 = scalar_lea.vmem %s636, 144
      %v643 = vld [vmem:[%s642] ss:$2 sm:$0xff]
      %s644 = scalar_lea.vmem %s636, 192
      %v645 = vld [vmem:[%s644] ss:$2 sm:$0xff]
      %s646 = scalar_lea.vmem %s636, 240
      %v647 = vld [vmem:[%s646] ss:$2 sm:$0xff]
      %s648 = scalar_lea.vmem %s636, 288
      %v649 = vld [vmem:[%s648] ss:$2 sm:$0xff]
      %s650 = scalar_lea.vmem %s636, 336
      %v651 = vld [vmem:[%s650] ss:$2 sm:$0xff]
      %v652 = vmax.f32 %v628, %v637
      %v653 = vmax.f32 %v629, %v639
      %v654 = vmax.f32 %v630, %v641
      %v655 = vmax.f32 %v631, %v643
      %v656 = vmax.f32 %v632, %v645
      %v657 = vmax.f32 %v633, %v647
      %v658 = vmax.f32 %v634, %v649
      %v659 = vmax.f32 %v635, %v651
      %s660 = scalar_lea.vmem %s636, 1
      %v661 = vld [vmem:[%s660] ss:$2 sm:$0xff]
      %s662 = scalar_lea.vmem %s636, 49
      %v663 = vld [vmem:[%s662] ss:$2 sm:$0xff]
      %s664 = scalar_lea.vmem %s636, 97
      %v665 = vld [vmem:[%s664] ss:$2 sm:$0xff]
      %s666 = scalar_lea.vmem %s636, 145
      %v667 = vld [vmem:[%s666] ss:$2 sm:$0xff]
      %s668 = scalar_lea.vmem %s636, 193
      %v669 = vld [vmem:[%s668] ss:$2 sm:$0xff]
      %s670 = scalar_lea.vmem %s636, 241
      %v671 = vld [vmem:[%s670] ss:$2 sm:$0xff]
      %s672 = scalar_lea.vmem %s636, 289
      %v673 = vld [vmem:[%s672] ss:$2 sm:$0xff]
      %s674 = scalar_lea.vmem %s636, 337
      %v675 = vld [vmem:[%s674] ss:$2 sm:$0xff]
      %v676 = vmax.f32 %v652, %v661
      %v677 = vmax.f32 %v653, %v663
      %v678 = vmax.f32 %v654, %v665
      %v679 = vmax.f32 %v655, %v667
      %v680 = vmax.f32 %v656, %v669
      %v681 = vmax.f32 %v657, %v671
      %v682 = vmax.f32 %v658, %v673
      %v683 = vmax.f32 %v659, %v675
      %s684 = scalar_lea.vmem %s636, 2
      %v685 = vld [vmem:[%s684] ss:$2 sm:$0xff]
      %s686 = scalar_lea.vmem %s636, 50
      %v687 = vld [vmem:[%s686] ss:$2 sm:$0xff]
      %s688 = scalar_lea.vmem %s636, 98
      %v689 = vld [vmem:[%s688] ss:$2 sm:$0xff]
      %s690 = scalar_lea.vmem %s636, 146
      %v691 = vld [vmem:[%s690] ss:$2 sm:$0xff]
      %s692 = scalar_lea.vmem %s636, 194
      %v693 = vld [vmem:[%s692] ss:$2 sm:$0xff]
      %s694 = scalar_lea.vmem %s636, 242
      %v695 = vld [vmem:[%s694] ss:$2 sm:$0xff]
      %s696 = scalar_lea.vmem %s636, 290
      %v697 = vld [vmem:[%s696] ss:$2 sm:$0xff]
      %s698 = scalar_lea.vmem %s636, 338
      %v699 = vld [vmem:[%s698] ss:$2 sm:$0xff]
      %v700 = vmax.f32 %v676, %v685
      %v701 = vmax.f32 %v677, %v687
      %v702 = vmax.f32 %v678, %v689
      %v703 = vmax.f32 %v679, %v691
      %v704 = vmax.f32 %v680, %v693
      %v705 = vmax.f32 %v681, %v695
      %v706 = vmax.f32 %v682, %v697
      %v707 = vmax.f32 %v683, %v699
      %s708 = scalar_lea.vmem %s327, 48
      %v709 = vld [vmem:[%s708] ss:$2 sm:$0xff]
      %s710 = scalar_lea.vmem %s708, 48
      %v711 = vld [vmem:[%s710] ss:$2 sm:$0xff]
      %s712 = scalar_lea.vmem %s708, 96
      %v713 = vld [vmem:[%s712] ss:$2 sm:$0xff]
      %s714 = scalar_lea.vmem %s708, 144
      %v715 = vld [vmem:[%s714] ss:$2 sm:$0xff]
      %s716 = scalar_lea.vmem %s708, 192
      %v717 = vld [vmem:[%s716] ss:$2 sm:$0xff]
      %s718 = scalar_lea.vmem %s708, 240
      %v719 = vld [vmem:[%s718] ss:$2 sm:$0xff]
      %s720 = scalar_lea.vmem %s708, 288
      %v721 = vld [vmem:[%s720] ss:$2 sm:$0xff]
      %s722 = scalar_lea.vmem %s708, 336
      %v723 = vld [vmem:[%s722] ss:$2 sm:$0xff]
      %v724 = vmax.f32 %v700, %v709
      %v725 = vmax.f32 %v701, %v711
      %v726 = vmax.f32 %v702, %v713
      %v727 = vmax.f32 %v703, %v715
      %v728 = vmax.f32 %v704, %v717
      %v729 = vmax.f32 %v705, %v719
      %v730 = vmax.f32 %v706, %v721
      %v731 = vmax.f32 %v707, %v723
      %s732 = scalar_lea.vmem %s708, 1
      %v733 = vld [vmem:[%s732] ss:$2 sm:$0xff]
      %s734 = scalar_lea.vmem %s708, 49
      %v735 = vld [vmem:[%s734] ss:$2 sm:$0xff]
      %s736 = scalar_lea.vmem %s708, 97
      %v737 = vld [vmem:[%s736] ss:$2 sm:$0xff]
      %s738 = scalar_lea.vmem %s708, 145
      %v739 = vld [vmem:[%s738] ss:$2 sm:$0xff]
      %s740 = scalar_lea.vmem %s708, 193
      %v741 = vld [vmem:[%s740] ss:$2 sm:$0xff]
      %s742 = scalar_lea.vmem %s708, 241
      %v743 = vld [vmem:[%s742] ss:$2 sm:$0xff]
      %s744 = scalar_lea.vmem %s708, 289
      %v745 = vld [vmem:[%s744] ss:$2 sm:$0xff]
      %s746 = scalar_lea.vmem %s708, 337
      %v747 = vld [vmem:[%s746] ss:$2 sm:$0xff]
      %v748 = vmax.f32 %v724, %v733
      %v749 = vmax.f32 %v725, %v735
      %v750 = vmax.f32 %v726, %v737
      %v751 = vmax.f32 %v727, %v739
      %v752 = vmax.f32 %v728, %v741
      %v753 = vmax.f32 %v729, %v743
      %v754 = vmax.f32 %v730, %v745
      %v755 = vmax.f32 %v731, %v747
      %s756 = scalar_lea.vmem %s708, 2
      %v757 = vld [vmem:[%s756] ss:$2 sm:$0xff]
      %s758 = scalar_lea.vmem %s708, 50
      %v759 = vld [vmem:[%s758] ss:$2 sm:$0xff]
      %s760 = scalar_lea.vmem %s708, 98
      %v761 = vld [vmem:[%s760] ss:$2 sm:$0xff]
      %s762 = scalar_lea.vmem %s708, 146
      %v763 = vld [vmem:[%s762] ss:$2 sm:$0xff]
      %s764 = scalar_lea.vmem %s708, 194
      %v765 = vld [vmem:[%s764] ss:$2 sm:$0xff]
      %s766 = scalar_lea.vmem %s708, 242
      %v767 = vld [vmem:[%s766] ss:$2 sm:$0xff]
      %s768 = scalar_lea.vmem %s708, 290
      %v769 = vld [vmem:[%s768] ss:$2 sm:$0xff]
      %s770 = scalar_lea.vmem %s708, 338
      %v771 = vld [vmem:[%s770] ss:$2 sm:$0xff]
      %v772 = vmax.f32 %v748, %v757
      %v773 = vmax.f32 %v749, %v759
      %v774 = vmax.f32 %v750, %v761
      %v775 = vmax.f32 %v751, %v763
      %v776 = vmax.f32 %v752, %v765
      %v777 = vmax.f32 %v753, %v767
      %v778 = vmax.f32 %v754, %v769
      %v779 = vmax.f32 %v755, %v771
      %v780 = vld [vmem:[%s343] ss:$2 sm:$0xff]
      %s781 = scalar_lea.vmem %s343, 48
      %v782 = vld [vmem:[%s781] ss:$2 sm:$0xff]
      %s783 = scalar_lea.vmem %s343, 96
      %v784 = vld [vmem:[%s783] ss:$2 sm:$0xff]
      %s785 = scalar_lea.vmem %s343, 144
      %v786 = vld [vmem:[%s785] ss:$2 sm:$0xff]
      %s787 = scalar_lea.vmem %s343, 192
      %v788 = vld [vmem:[%s787] ss:$2 sm:$0xff]
      %s789 = scalar_lea.vmem %s343, 240
      %v790 = vld [vmem:[%s789] ss:$2 sm:$0xff]
      %s791 = scalar_lea.vmem %s343, 288
      %v792 = vld [vmem:[%s791] ss:$2 sm:$0xff]
      %s793 = scalar_lea.vmem %s343, 336
      %v794 = vld [vmem:[%s793] ss:$2 sm:$0xff]
      %v795 = vmax.f32 %v772, %v780
      %v796 = vmax.f32 %v773, %v782
      %v797 = vmax.f32 %v774, %v784
      %v798 = vmax.f32 %v775, %v786
      %v799 = vmax.f32 %v776, %v788
      %v800 = vmax.f32 %v777, %v790
      %v801 = vmax.f32 %v778, %v792
      %v802 = vmax.f32 %v779, %v794
      %s803 = scalar_lea.vmem %s343, 1
      %v804 = vld [vmem:[%s803] ss:$2 sm:$0xff]
      %s805 = scalar_lea.vmem %s343, 49
      %v806 = vld [vmem:[%s805] ss:$2 sm:$0xff]
      %s807 = scalar_lea.vmem %s343, 97
      %v808 = vld [vmem:[%s807] ss:$2 sm:$0xff]
      %s809 = scalar_lea.vmem %s343, 145
      %v810 = vld [vmem:[%s809] ss:$2 sm:$0xff]
      %s811 = scalar_lea.vmem %s343, 193
      %v812 = vld [vmem:[%s811] ss:$2 sm:$0xff]
      %s813 = scalar_lea.vmem %s343, 241
      %v814 = vld [vmem:[%s813] ss:$2 sm:$0xff]
      %s815 = scalar_lea.vmem %s343, 289
      %v816 = vld [vmem:[%s815] ss:$2 sm:$0xff]
      %s817 = scalar_lea.vmem %s343, 337
      %v818 = vld [vmem:[%s817] ss:$2 sm:$0xff]
      %v819 = vmax.f32 %v795, %v804
      %v820 = vmax.f32 %v796, %v806
      %v821 = vmax.f32 %v797, %v808
      %v822 = vmax.f32 %v798, %v810
      %v823 = vmax.f32 %v799, %v812
      %v824 = vmax.f32 %v800, %v814
      %v825 = vmax.f32 %v801, %v816
      %v826 = vmax.f32 %v802, %v818
      %s827 = scalar_lea.vmem %s343, 2
      %v828 = vld [vmem:[%s827] ss:$2 sm:$0xff]
      %s829 = scalar_lea.vmem %s343, 50
      %v830 = vld [vmem:[%s829] ss:$2 sm:$0xff]
      %s831 = scalar_lea.vmem %s343, 98
      %v832 = vld [vmem:[%s831] ss:$2 sm:$0xff]
      %s833 = scalar_lea.vmem %s343, 146
      %v834 = vld [vmem:[%s833] ss:$2 sm:$0xff]
      %s835 = scalar_lea.vmem %s343, 194
      %v836 = vld [vmem:[%s835] ss:$2 sm:$0xff]
      %s837 = scalar_lea.vmem %s343, 242
      %v838 = vld [vmem:[%s837] ss:$2 sm:$0xff]
      %s839 = scalar_lea.vmem %s343, 290
      %v840 = vld [vmem:[%s839] ss:$2 sm:$0xff]
      %s841 = scalar_lea.vmem %s343, 338
      %v842 = vld [vmem:[%s841] ss:$2 sm:$0xff]
      %v843 = vmax.f32 %v819, %v828
      %v844 = vmax.f32 %v820, %v830
      %v845 = vmax.f32 %v821, %v832
      %v846 = vmax.f32 %v822, %v834
      %v847 = vmax.f32 %v823, %v836
      %v848 = vmax.f32 %v824, %v838
      %v849 = vmax.f32 %v825, %v840
      %v850 = vmax.f32 %v826, %v842
      %s851 = scalar_lea.vmem %s343, 24
      %v852 = vld [vmem:[%s851] ss:$2 sm:$0xff]
      %s853 = scalar_lea.vmem %s851, 48
      %v854 = vld [vmem:[%s853] ss:$2 sm:$0xff]
      %s855 = scalar_lea.vmem %s851, 96
      %v856 = vld [vmem:[%s855] ss:$2 sm:$0xff]
      %s857 = scalar_lea.vmem %s851, 144
      %v858 = vld [vmem:[%s857] ss:$2 sm:$0xff]
      %s859 = scalar_lea.vmem %s851, 192
      %v860 = vld [vmem:[%s859] ss:$2 sm:$0xff]
      %s861 = scalar_lea.vmem %s851, 240
      %v862 = vld [vmem:[%s861] ss:$2 sm:$0xff]
      %s863 = scalar_lea.vmem %s851, 288
      %v864 = vld [vmem:[%s863] ss:$2 sm:$0xff]
      %s865 = scalar_lea.vmem %s851, 336
      %v866 = vld [vmem:[%s865] ss:$2 sm:$0xff]
      %v867 = vmax.f32 %v843, %v852
      %v868 = vmax.f32 %v844, %v854
      %v869 = vmax.f32 %v845, %v856
      %v870 = vmax.f32 %v846, %v858
      %v871 = vmax.f32 %v847, %v860
      %v872 = vmax.f32 %v848, %v862
      %v873 = vmax.f32 %v849, %v864
      %v874 = vmax.f32 %v850, %v866
      %s875 = scalar_lea.vmem %s851, 1
      %v876 = vld [vmem:[%s875] ss:$2 sm:$0xff]
      %s877 = scalar_lea.vmem %s851, 49
      %v878 = vld [vmem:[%s877] ss:$2 sm:$0xff]
      %s879 = scalar_lea.vmem %s851, 97
      %v880 = vld [vmem:[%s879] ss:$2 sm:$0xff]
      %s881 = scalar_lea.vmem %s851, 145
      %v882 = vld [vmem:[%s881] ss:$2 sm:$0xff]
      %s883 = scalar_lea.vmem %s851, 193
      %v884 = vld [vmem:[%s883] ss:$2 sm:$0xff]
      %s885 = scalar_lea.vmem %s851, 241
      %v886 = vld [vmem:[%s885] ss:$2 sm:$0xff]
      %s887 = scalar_lea.vmem %s851, 289
      %v888 = vld [vmem:[%s887] ss:$2 sm:$0xff]
      %s889 = scalar_lea.vmem %s851, 337
      %v890 = vld [vmem:[%s889] ss:$2 sm:$0xff]
      %v891 = vmax.f32 %v867, %v876
      %v892 = vmax.f32 %v868, %v878
      %v893 = vmax.f32 %v869, %v880
      %v894 = vmax.f32 %v870, %v882
      %v895 = vmax.f32 %v871, %v884
      %v896 = vmax.f32 %v872, %v886
      %v897 = vmax.f32 %v873, %v888
      %v898 = vmax.f32 %v874, %v890
      %s899 = scalar_lea.vmem %s851, 2
      %v900 = vld [vmem:[%s899] ss:$2 sm:$0xff]
      %s901 = scalar_lea.vmem %s851, 50
      %v902 = vld [vmem:[%s901] ss:$2 sm:$0xff]
      %s903 = scalar_lea.vmem %s851, 98
      %v904 = vld [vmem:[%s903] ss:$2 sm:$0xff]
      %s905 = scalar_lea.vmem %s851, 146
      %v906 = vld [vmem:[%s905] ss:$2 sm:$0xff]
      %s907 = scalar_lea.vmem %s851, 194
      %v908 = vld [vmem:[%s907] ss:$2 sm:$0xff]
      %s909 = scalar_lea.vmem %s851, 242
      %v910 = vld [vmem:[%s909] ss:$2 sm:$0xff]
      %s911 = scalar_lea.vmem %s851, 290
      %v912 = vld [vmem:[%s911] ss:$2 sm:$0xff]
      %s913 = scalar_lea.vmem %s851, 338
      %v914 = vld [vmem:[%s913] ss:$2 sm:$0xff]
      %v915 = vmax.f32 %v891, %v900
      %v916 = vmax.f32 %v892, %v902
      %v917 = vmax.f32 %v893, %v904
      %v918 = vmax.f32 %v894, %v906
      %v919 = vmax.f32 %v895, %v908
      %v920 = vmax.f32 %v896, %v910
      %v921 = vmax.f32 %v897, %v912
      %v922 = vmax.f32 %v898, %v914
      %s923 = scalar_lea.vmem %s343, 48
      %v924 = vld [vmem:[%s923] ss:$2 sm:$0xff]
      %s925 = scalar_lea.vmem %s923, 48
      %v926 = vld [vmem:[%s925] ss:$2 sm:$0xff]
      %s927 = scalar_lea.vmem %s923, 96
      %v928 = vld [vmem:[%s927] ss:$2 sm:$0xff]
      %s929 = scalar_lea.vmem %s923, 144
      %v930 = vld [vmem:[%s929] ss:$2 sm:$0xff]
      %s931 = scalar_lea.vmem %s923, 192
      %v932 = vld [vmem:[%s931] ss:$2 sm:$0xff]
      %s933 = scalar_lea.vmem %s923, 240
      %v934 = vld [vmem:[%s933] ss:$2 sm:$0xff]
      %s935 = scalar_lea.vmem %s923, 288
      %v936 = vld [vmem:[%s935] ss:$2 sm:$0xff]
      %s937 = scalar_lea.vmem %s923, 336
      %v938 = vld [vmem:[%s937] ss:$2 sm:$0xff]
      %v939 = vmax.f32 %v915, %v924
      %v940 = vmax.f32 %v916, %v926
      %v941 = vmax.f32 %v917, %v928
      %v942 = vmax.f32 %v918, %v930
      %v943 = vmax.f32 %v919, %v932
      %v944 = vmax.f32 %v920, %v934
      %v945 = vmax.f32 %v921, %v936
      %v946 = vmax.f32 %v922, %v938
      %s947 = scalar_lea.vmem %s923, 1
      %v948 = vld [vmem:[%s947] ss:$2 sm:$0xff]
      %s949 = scalar_lea.vmem %s923, 49
      %v950 = vld [vmem:[%s949] ss:$2 sm:$0xff]
      %s951 = scalar_lea.vmem %s923, 97
      %v952 = vld [vmem:[%s951] ss:$2 sm:$0xff]
      %s953 = scalar_lea.vmem %s923, 145
      %v954 = vld [vmem:[%s953] ss:$2 sm:$0xff]
      %s955 = scalar_lea.vmem %s923, 193
      %v956 = vld [vmem:[%s955] ss:$2 sm:$0xff]
      %s957 = scalar_lea.vmem %s923, 241
      %v958 = vld [vmem:[%s957] ss:$2 sm:$0xff]
      %s959 = scalar_lea.vmem %s923, 289
      %v960 = vld [vmem:[%s959] ss:$2 sm:$0xff]
      %s961 = scalar_lea.vmem %s923, 337
      %v962 = vld [vmem:[%s961] ss:$2 sm:$0xff]
      %v963 = vmax.f32 %v939, %v948
      %v964 = vmax.f32 %v940, %v950
      %v965 = vmax.f32 %v941, %v952
      %v966 = vmax.f32 %v942, %v954
      %v967 = vmax.f32 %v943, %v956
      %v968 = vmax.f32 %v944, %v958
      %v969 = vmax.f32 %v945, %v960
      %v970 = vmax.f32 %v946, %v962
      %s971 = scalar_lea.vmem %s923, 2
      %v972 = vld [vmem:[%s971] ss:$2 sm:$0xff]
      %s973 = scalar_lea.vmem %s923, 50
      %v974 = vld [vmem:[%s973] ss:$2 sm:$0xff]
      %s975 = scalar_lea.vmem %s923, 98
      %v976 = vld [vmem:[%s975] ss:$2 sm:$0xff]
      %s977 = scalar_lea.vmem %s923, 146
      %v978 = vld [vmem:[%s977] ss:$2 sm:$0xff]
      %s979 = scalar_lea.vmem %s923, 194
      %v980 = vld [vmem:[%s979] ss:$2 sm:$0xff]
      %s981 = scalar_lea.vmem %s923, 242
      %v982 = vld [vmem:[%s981] ss:$2 sm:$0xff]
      %s983 = scalar_lea.vmem %s923, 290
      %v984 = vld [vmem:[%s983] ss:$2 sm:$0xff]
      %s985 = scalar_lea.vmem %s923, 338
      %v986 = vld [vmem:[%s985] ss:$2 sm:$0xff]
      %v987 = vmax.f32 %v963, %v972
      %v988 = vmax.f32 %v964, %v974
      %v989 = vmax.f32 %v965, %v976
      %v990 = vmax.f32 %v966, %v978
      %v991 = vmax.f32 %v967, %v980
      %v992 = vmax.f32 %v968, %v982
      %v993 = vmax.f32 %v969, %v984
      %v994 = vmax.f32 %v970, %v986
      %vm995 = vcmask 31744
      %996 = vst.msk [vmem:[%s357] sm:$0xff] %vm995, %v987
      %997 = vst.msk [vmem:[%s357 + $0x8] sm:$0xff] %vm995, %v988
      %998 = vst.msk [vmem:[%s357 + $0x10] sm:$0xff] %vm995, %v989
      %999 = vst.msk [vmem:[%s357 + $0x18] sm:$0xff] %vm995, %v990
      %1000 = vst.msk [vmem:[%s357 + $0x20] sm:$0xff] %vm995, %v991
      %1001 = vst.msk [vmem:[%s357 + $0x28] sm:$0xff] %vm995, %v992
      %1002 = vst.msk [vmem:[%s357 + $0x30] sm:$0xff] %vm995, %v993
      %1003 = vst.msk [vmem:[%s357 + $0x38] sm:$0xff] %vm995, %v994
      %p1004 = scmp.lt.s32.totalorder %s19, 1
      %s1005 = scalar_select %p1004, %s19, 1
      %p1006 = scmp.lt.s32.totalorder %s21, 3
      %s1007 = scalar_select %p1006, %s21, 3
      %p1008 = scmp.lt.s32.totalorder %s20, 0
      %s1009 = scalar_select %p1008, %s20, 0
      %s1010 = smul.addr %s1007, 8
      %s1011 = sadd.s32 %s1009, %s1010
      %s1012 = smul.addr %s1005, 32
      %s1013 = sadd.s32 %s1011, %s1012
      %s1014 = smul.addr %s1013, 8
      %s1015 = scalar_lea.vmem %s3, %s1014
      // Predicated region
      $region33: #{tpu_custom_call.1} parent=31 // pred_check
        %p1016 = pneg %p155
      $region34: #{tpu_custom_call.1} parent=31 // pred_check_branch
        %1018 = sbr.rel (%p1016) target = $region36
      $region35: #{tpu_custom_call.1} parent=31 // pred_region
        _
      $region36: #{tpu_custom_call.1} parent=31 // pred_fallthru
        _
    $region32: #{tpu_custom_call.1} parent=5 // pred_fallthru
      _
    %p1019 = scmp.le.s32.totalorder 2, %s9
    // Predicated region
    $region37: #{tpu_custom_call.1} parent=5 // pred_check
      %p1020 = pneg %p1019
    $region38: #{tpu_custom_call.1} parent=5 // pred_check_branch
      %1022 = sbr.rel (%p1020) target = $region40
    $region39: #{tpu_custom_call.1} parent=5 // pred_region
      %s1023 = ssub.s32 %s9, 2
      // Predicated region
      $region41: #{tpu_custom_call.1} parent=39 // pred_check
        %p1024 = pneg %p161
      $region42: #{tpu_custom_call.1} parent=39 // pred_check_branch
        %1026 = sbr.rel (%p1024) target = $region44
      $region43: #{tpu_custom_call.1} parent=39 // pred_region
        %p1027 = scmp.lt.s32.totalorder %s22, 1
        %s1028 = scalar_select %p1027, %s22, 1
        %p1029 = scmp.lt.s32.totalorder %s24, 3
        %s1030 = scalar_select %p1029, %s24, 3
        %p1031 = scmp.lt.s32.totalorder %s23, 0
        %s1032 = scalar_select %p1031, %s23, 0
        %s1033 = smul.addr %s1030, 8
        %s1034 = sadd.s32 %s1032, %s1033
        %s1035 = smul.addr %s1028, 32
        %s1036 = sadd.s32 %s1034, %s1035
        %s1037 = smul.addr %s1036, 8
        %s1038 = scalar_lea.vmem %s3, %s1037
      $region44: #{tpu_custom_call.1} parent=39 // pred_fallthru
        _
    $region40: #{tpu_custom_call.1} parent=5 // pred_fallthru
      _
  $region6: #{tpu_custom_call.1} parent=0 // loop_footer
    %s13 = sadd.s32 1, %s9
  $region7: #{tpu_custom_call.1} parent=0 // loop_footer_branch
    %8 = sbr.rel target = $region3
  $region8: #{tpu_custom_call.1} parent=0 // loop_exit
    _

</llo_original>
